<compile_context>
chip_gen: v7x
topology: tpu7x:2x2x1
jax: 0.10.0
libtpu: 0.0.40
codegen_flags: <defaults>
</compile_context>

<pallas_src>
import jax
import jax.numpy as jnp
from jax.experimental import pallas as pl
from jax.experimental.pallas import tpu as pltpu

IN_DIM = 3
HID_DIM = 64
OUT_DIM = 28 * 28      # 784
HID_PAD = 128          # lane-dense hidden width
OUT_PAD = 896          # 7 * 128 -> unmasked full-lane stores
MAX_TB = 2048          # batch tile sized for v7x's 64 MiB VMEM


def _round_up(n, m):
    return (n + m - 1) // m * m


def decoder_kernel(x_ref, w1_ref, b1_ref, w2_ref, b2_ref, o_ref):
    x = x_ref[...]                       # (TB, 3)   f32
    w1 = w1_ref[...]                     # (3, 128)  f32
    # First layer: K=3 contraction is <2% MXU utilization -> 3 VPU FMAs instead.
    h = b1_ref[...]                      # (1, 128) broadcast over sublanes
    for k in range(IN_DIM):              # static unroll
        h = h + x[:, k:k + 1] * w1[k:k + 1, :]
    h = jnp.maximum(h, 0.0)              # ReLU, (TB, 128)
    # Second layer on the MXU in bf16, f32 accumulation, f32 bias add.
    y = jnp.dot(h.astype(jnp.bfloat16), w2_ref[...],
                preferred_element_type=jnp.float32)
    o_ref[...] = (y + b2_ref[...]).astype(o_ref.dtype)


def decoder_forward(x, w1_t, b1, w2_t, b2):
    """x: (B, 3); w1_t: (3, 64); b1: (1, 64); w2_t: (64, 784); b2: (1, 784)."""
    B = x.shape[0]
    b1 = jnp.asarray(b1).reshape(1, HID_DIM)
    b2 = jnp.asarray(b2).reshape(1, OUT_DIM)

    # Zero-pad weights/biases to lane-dense widths. Padded hidden columns have
    # zero weight+bias (ReLU(0)=0) and padded w2 rows/cols are zero, so the
    # valid [:, :784] region is unchanged.
    w1_p = jnp.zeros((IN_DIM, HID_PAD), jnp.float32).at[:, :HID_DIM].set(w1_t)
    b1_p = jnp.zeros((1, HID_PAD), jnp.float32).at[:, :HID_DIM].set(b1)
    w2_p = (jnp.zeros((HID_PAD, OUT_PAD), jnp.float32)
            .at[:HID_DIM, :OUT_DIM].set(w2_t)).astype(jnp.bfloat16)
    b2_p = jnp.zeros((1, OUT_PAD), jnp.float32).at[:, :OUT_DIM].set(b2)

    # Batch tile: large enough to amortize ~0.35 us/step grid overhead, small
    # enough that 2 x (TB x 896 x 4B) output buffers stay well under 64 MiB.
    TB = min(MAX_TB, _round_up(B, 8))
    B_pad = _round_up(B, TB)
    if B_pad != B:
        x = jnp.pad(x, ((0, B_pad - B), (0, 0)))

    out = pl.pallas_call(
        decoder_kernel,
        out_shape=jax.ShapeDtypeStruct((B_pad, OUT_PAD), jnp.float32),
        grid=(B_pad // TB,),
        in_specs=[
            pl.BlockSpec((TB, IN_DIM), lambda i: (i, 0)),        # x streams per tile
            pl.BlockSpec((IN_DIM, HID_PAD), lambda i: (0, 0)),   # weights VMEM-resident
            pl.BlockSpec((1, HID_PAD), lambda i: (0, 0)),
            pl.BlockSpec((HID_PAD, OUT_PAD), lambda i: (0, 0)),
            pl.BlockSpec((1, OUT_PAD), lambda i: (0, 0)),
        ],
        out_specs=pl.BlockSpec((TB, OUT_PAD), lambda i: (i, 0)),
        compiler_params=pltpu.CompilerParams(
            dimension_semantics=("parallel",),
            vmem_limit_bytes=48 * 1024 * 1024,
        ),
    )(x, w1_p, b1_p, w2_p, b2_p)

    # Slice away batch padding and the 784->896 lane padding.
    return out[:B, :OUT_DIM]


def init_params(key):
    # Deterministic init mimicking PyTorch nn.Linear (uniform in +-1/sqrt(fan_in)).
    k1, k2, k3, k4 = jax.random.split(key, 4)
    bound1 = 1.0 / (IN_DIM ** 0.5)
    bound2 = 1.0 / (HID_DIM ** 0.5)
    # PyTorch stores W as (out, in); we keep the transposed (in, out) layout.
    w1_t = jax.random.uniform(k1, (IN_DIM, HID_DIM), jnp.float32, -bound1, bound1)
    b1 = jax.random.uniform(k2, (1, HID_DIM), jnp.float32, -bound1, bound1)
    w2_t = jax.random.uniform(k3, (HID_DIM, OUT_DIM), jnp.float32, -bound2, bound2)
    b2 = jax.random.uniform(k4, (1, OUT_DIM), jnp.float32, -bound2, bound2)
    return w1_t, b1, w2_t, b2


if __name__ == "__main__":
    key = jax.random.PRNGKey(0)
    k_x, k_p = jax.random.split(key)

    B = 8
    x = jax.random.normal(k_x, (B, IN_DIM), jnp.float32)
    w1_t, b1, w2_t, b2 = init_params(k_p)

    out = decoder_forward(x, w1_t, b1, w2_t, b2)
    out = jax.block_until_ready(out)

    # Reference check (same math as the PyTorch forward, full f32).
    h_ref = jnp.maximum(x @ w1_t + b1, 0.0)
    ref_f32 = h_ref @ w2_t + b2
    # bf16-matched reference for the second matmul (kernel uses bf16 on the MXU).
    ref_bf16 = (jnp.dot(h_ref.astype(jnp.bfloat16), w2_t.astype(jnp.bfloat16),
                        preferred_element_type=jnp.float32) + b2)

    assert out.shape == (B, OUT_DIM)
    assert jnp.allclose(out, ref_bf16, atol=1e-3, rtol=1e-3)
    assert jnp.allclose(out, ref_f32, atol=2e-2, rtol=2e-2)

    print("KERNEL_OK")
</pallas_src>

<mosaic_0001>
module attributes {stable_mosaic.version = 11 : i64} {
  func.func @decoder_kernel(%arg0: i32, %arg1: memref<8x3xf32, #tpu.memory_space<vmem>>, %arg2: memref<3x128xf32, #tpu.memory_space<vmem>>, %arg3: memref<1x128xf32, #tpu.memory_space<vmem>>, %arg4: memref<128x896xbf16, #tpu.memory_space<vmem>>, %arg5: memref<1x896xf32, #tpu.memory_space<vmem>>, %arg6: memref<8x896xf32, #tpu.memory_space<vmem>>) attributes {dimension_semantics = [#tpu.dimension_semantics<parallel>], iteration_bounds = array<i64: 1>, scalar_prefetch = 0 : i64, scratch_operands = 0 : i64, tpu.core_type = #tpu.core_type<tc>, window_params = [{transform_indices = @transform_0, window_bounds = array<i64: 8, 3>}, {pipeline_mode = #tpu.pipeline_mode<synchronous>, transform_indices = @transform_1, window_bounds = array<i64: 3, 128>}, {pipeline_mode = #tpu.pipeline_mode<synchronous>, transform_indices = @transform_2, window_bounds = array<i64: 1, 128>}, {pipeline_mode = #tpu.pipeline_mode<synchronous>, transform_indices = @transform_3, window_bounds = array<i64: 128, 896>}, {pipeline_mode = #tpu.pipeline_mode<synchronous>, transform_indices = @transform_4, window_bounds = array<i64: 1, 896>}, {transform_indices = @transform_5, window_bounds = array<i64: 8, 896>}]} {
    %c0 = arith.constant 0 : index
    %c0_0 = arith.constant 0 : index
    %0 = vector.load %arg1[%c0, %c0_0] : memref<8x3xf32, #tpu.memory_space<vmem>>, vector<8x3xf32>
    %c0_1 = arith.constant 0 : index
    %c0_2 = arith.constant 0 : index
    %1 = vector.load %arg2[%c0_1, %c0_2] : memref<3x128xf32, #tpu.memory_space<vmem>>, vector<3x128xf32>
    %c0_3 = arith.constant 0 : index
    %c0_4 = arith.constant 0 : index
    %2 = vector.load %arg3[%c0_3, %c0_4] : memref<1x128xf32, #tpu.memory_space<vmem>>, vector<1x128xf32>
    %3 = vector.extract_strided_slice %0 {offsets = [0, 0], sizes = [8, 1], strides = [1, 1]} : vector<8x3xf32> to vector<8x1xf32>
    %4 = vector.extract_strided_slice %1 {offsets = [0, 0], sizes = [1, 128], strides = [1, 1]} : vector<3x128xf32> to vector<1x128xf32>
    %5 = vector.broadcast %3 : vector<8x1xf32> to vector<8x128xf32>
    %6 = vector.broadcast %4 : vector<1x128xf32> to vector<8x128xf32>
    %7 = arith.mulf %5, %6 : vector<8x128xf32>
    %8 = vector.broadcast %2 : vector<1x128xf32> to vector<8x128xf32>
    %9 = arith.addf %8, %7 : vector<8x128xf32>
    %10 = vector.extract_strided_slice %0 {offsets = [0, 1], sizes = [8, 1], strides = [1, 1]} : vector<8x3xf32> to vector<8x1xf32>
    %11 = vector.extract_strided_slice %1 {offsets = [1, 0], sizes = [1, 128], strides = [1, 1]} : vector<3x128xf32> to vector<1x128xf32>
    %12 = vector.broadcast %10 : vector<8x1xf32> to vector<8x128xf32>
    %13 = vector.broadcast %11 : vector<1x128xf32> to vector<8x128xf32>
    %14 = arith.mulf %12, %13 : vector<8x128xf32>
    %15 = arith.addf %9, %14 : vector<8x128xf32>
    %16 = vector.extract_strided_slice %0 {offsets = [0, 2], sizes = [8, 1], strides = [1, 1]} : vector<8x3xf32> to vector<8x1xf32>
    %17 = vector.extract_strided_slice %1 {offsets = [2, 0], sizes = [1, 128], strides = [1, 1]} : vector<3x128xf32> to vector<1x128xf32>
    %18 = vector.broadcast %16 : vector<8x1xf32> to vector<8x128xf32>
    %19 = vector.broadcast %17 : vector<1x128xf32> to vector<8x128xf32>
    %20 = arith.mulf %18, %19 : vector<8x128xf32>
    %21 = arith.addf %15, %20 : vector<8x128xf32>
    %cst = arith.constant 0.000000e+00 : f32
    %22 = vector.broadcast %cst : f32 to vector<8x128xf32>
    %23 = arith.maximumf %21, %22 : vector<8x128xf32>
    %24 = arith.truncf %23 : vector<8x128xf32> to vector<8x128xbf16>
    %c0_5 = arith.constant 0 : index
    %c0_6 = arith.constant 0 : index
    %25 = vector.load %arg4[%c0_5, %c0_6] : memref<128x896xbf16, #tpu.memory_space<vmem>>, vector<128x896xbf16>
    %cst_7 = arith.constant dense<0.000000e+00> : vector<8x896xf32>
    %26 = tpu.matmul %24, %25, %cst_7 {dimension_numbers = #tpu.dot_dimension_numbers<[1], [0], [0], [1], [0, 0, 1, 1], [], []>} : vector<8x128xbf16>, vector<128x896xbf16>, vector<8x896xf32> -> vector<8x896xf32>
    %c0_8 = arith.constant 0 : index
    %c0_9 = arith.constant 0 : index
    %27 = vector.load %arg5[%c0_8, %c0_9] : memref<1x896xf32, #tpu.memory_space<vmem>>, vector<1x896xf32>
    %28 = vector.broadcast %27 : vector<1x896xf32> to vector<8x896xf32>
    %29 = arith.addf %26, %28 : vector<8x896xf32>
    %c0_10 = arith.constant 0 : index
    %c0_11 = arith.constant 0 : index
    %30 = vector.load %arg6[%c0_10, %c0_11] : memref<8x896xf32, #tpu.memory_space<vmem>>, vector<8x896xf32>
    tpu.vector_store %arg6[%c0_10, %c0_11], %29 {strides = array<i32>} : memref<8x896xf32, #tpu.memory_space<vmem>>, vector<8x896xf32>,
    return
  }
  func.func @transform_0(%arg0: i32) -> (i32, i32) {
    %c0_i32 = arith.constant 0 : i32
    %c0_i32_0 = arith.constant 0 : i32
    return %arg0, %c0_i32 : i32, i32
  }
  func.func @transform_1(%arg0: i32) -> (i32, i32) {
    %c0_i32 = arith.constant 0 : i32
    %c0_i32_0 = arith.constant 0 : i32
    %c0_i32_1 = arith.constant 0 : i32
    return %c0_i32, %c0_i32_0 : i32, i32
  }
  func.func @transform_2(%arg0: i32) -> (i32, i32) {
    %c0_i32 = arith.constant 0 : i32
    %c0_i32_0 = arith.constant 0 : i32
    %c0_i32_1 = arith.constant 0 : i32
    return %c0_i32, %c0_i32_0 : i32, i32
  }
  func.func @transform_3(%arg0: i32) -> (i32, i32) {
    %c0_i32 = arith.constant 0 : i32
    %c0_i32_0 = arith.constant 0 : i32
    %c0_i32_1 = arith.constant 0 : i32
    return %c0_i32, %c0_i32_0 : i32, i32
  }
  func.func @transform_4(%arg0: i32) -> (i32, i32) {
    %c0_i32 = arith.constant 0 : i32
    %c0_i32_0 = arith.constant 0 : i32
    %c0_i32_1 = arith.constant 0 : i32
    return %c0_i32, %c0_i32_0 : i32, i32
  }
  func.func @transform_5(%arg0: i32) -> (i32, i32) {
    %c0_i32 = arith.constant 0 : i32
    %c0_i32_0 = arith.constant 0 : i32
    return %arg0, %c0_i32 : i32, i32
  }
}

</mosaic_0001>

<llo_original>
// kernel: tpu_custom_call.1
$region0: #{tpu_custom_call.1}
  #allocation0 [shape = 'u32[]', space=smem, size = 0x4, offset = 0x4, fixed_abs, tag = 'smem constant byte address 0x4 - core index']
  #allocation1 [shape = 'u32[144,128]{1,0:T(1,128)}', space=vmem, size = 0x12000, scoped, tag = 'internal scratch']
  %s0 = inlined_call_operand.vmem [shape: f32[8,3], index: 0, kind: input, shape index: {}]
  %s1 = inlined_call_operand.vmem [shape: f32[3,128], index: 1, kind: input, shape index: {}]
  %s2 = inlined_call_operand.vmem [shape: f32[1,128], index: 2, kind: input, shape index: {}]
  %s3 = inlined_call_operand.hbm [shape: bf16[128,896], index: 3, kind: input, shape index: {}]
  %s4 = inlined_call_operand.vmem [shape: f32[1,896], index: 4, kind: input, shape index: {}]
  %s5 = inlined_call_operand.hbm [shape: f32[8,896], index: 5, kind: output, shape index: {}]
  %s6 = sld [smem:[#allocation0]]
  $region34: #{tpu_custom_call.1} parent=0
    _
  %s8 = ssub.s32 1, %s6
  %s9 = scalar_select 0, %s8, %s6
  $region1: #{tpu_custom_call.1} parent=0
    #allocation2 [shape = 'u8[229376]{0}', space=vmem, size = 0x38000, scoped, tag = 'input window, operand 3, single buffered']
    #allocation3 [shape = 's32[1]{0}', space=sflag, size = 0x4, scoped, tag = 'scoped memory for tpu_custom_call.1']
    #allocation4 [shape = 's32[1]{0}', space=sflag, size = 0x4, scoped, tag = 'scoped memory for tpu_custom_call.1']
    #allocation5 [shape = 'u8[28672]{0}', space=vmem, size = 0x7000, scoped, tag = 'output window, operand 0, single buffered']
    %10 = vsyncpa [#allocation3], 0
    %11 = vsyncpa [#allocation4], 0
    // Predicated region
    $region2: #{tpu_custom_call.1} parent=1 // pred_check
      _
    $region3: #{tpu_custom_call.1} parent=1 // pred_check_branch
      %13 = sbr.rel (0) target = $region5
    $region4: #{tpu_custom_call.1} parent=1 // pred_region
      _
    $region5: #{tpu_custom_call.1} parent=1 // pred_fallthru
      _
    // Predicated region
    $region6: #{tpu_custom_call.1} parent=1 // pred_check
      _
    $region7: #{tpu_custom_call.1} parent=1 // pred_check_branch
      %15 = sbr.rel (0) target = $region9
    $region8: #{tpu_custom_call.1} parent=1 // pred_region
      _
    $region9: #{tpu_custom_call.1} parent=1 // pred_fallthru
      _
    // Predicated region
    $region10: #{tpu_custom_call.1} parent=1 // pred_check
      _
    $region11: #{tpu_custom_call.1} parent=1 // pred_check_branch
      %17 = sbr.rel (0) target = $region13
    $region12: #{tpu_custom_call.1} parent=1 // pred_region
      _
    $region13: #{tpu_custom_call.1} parent=1 // pred_fallthru
      _
    // Predicated region
    $region14: #{tpu_custom_call.1} parent=1 // pred_check
      _
    $region15: #{tpu_custom_call.1} parent=1 // pred_check_branch
      %19 = sbr.rel (0) target = $region17
    $region16: #{tpu_custom_call.1} parent=1 // pred_region
      %s21 = ssub.s32 7168, 7168
      %22 = vsyncadd [#allocation3], %s21
      %s23 = sshll.u32 [#allocation2], 4
      %s24 = int_to_ptr.vmem [resolvable:$true] %s23
      %29 = dma.hbm_to_vmem [thread:$0]  %s3, 7168, %s24, [#allocation3], 448, 448, 28
    $region17: #{tpu_custom_call.1} parent=1 // pred_fallthru
      _
    // Predicated region
    $region18: #{tpu_custom_call.1} parent=1 // pred_check
      _
    $region19: #{tpu_custom_call.1} parent=1 // pred_check_branch
      %31 = sbr.rel (0) target = $region21
    $region20: #{tpu_custom_call.1} parent=1 // pred_region
      _
    $region21: #{tpu_custom_call.1} parent=1 // pred_fallthru
      _
    // Predicated region
    $region22: #{tpu_custom_call.1} parent=1 // pred_check
      _
    $region23: #{tpu_custom_call.1} parent=1 // pred_check_branch
      %33 = sbr.rel (0) target = $region25
    $region24: #{tpu_custom_call.1} parent=1 // pred_region
      %34 = dma.done [#allocation3], 7168
    $region25: #{tpu_custom_call.1} parent=1 // pred_fallthru
      _
    %v36 = vld [vmem:[%s0] sm:$0xff]
    %v37 = vld [vmem:[%s1] sm:$0x7]
    %v38 = vld [vmem:[%s2] sm:$0x1]
    %40 = vset.pattern.permute.xlu0 0
    %41 = vperm.xlu0 %40, %v36
    %v42 = vpop.permute.xlu0 %41
    %v44 = vlaneseq
    %v45 = vshrl.u32 %v44, 7
    %v46 = vsub.s32 0, %v45
    %v47 = vrot.slane %v37, %v46
    %v48 = vmul.f32 %v42, %v47
    %v50 = vlaneseq
    %v51 = vshrl.u32 %v50, 7
    %v52 = vsub.s32 0, %v51
    %v53 = vrot.slane %v38, %v52
    %v55 = vadd.f32 %v53, %v48
    %56 = vset.pattern.permute.xlu0 1
    %57 = vperm.xlu0 %56, %v36
    %v58 = vpop.permute.xlu0 %57
    %v60 = vlaneseq
    %v61 = vshrl.u32 %v60, 7
    %v62 = vsub.s32 1, %v61
    %v63 = vrot.slane %v37, %v62
    %v64 = vmul.f32 %v58, %v63
    %v65 = vadd.f32 %v55, %v64
    %66 = vset.pattern.permute.xlu0 2
    %67 = vperm.xlu0 %66, %v36
    %v68 = vpop.permute.xlu0 %67
    %v70 = vlaneseq
    %v71 = vshrl.u32 %v70, 7
    %v72 = vsub.s32 2, %v71
    %v73 = vrot.slane %v37, %v72
    %v74 = vmul.f32 %v68, %v73
    %v75 = vadd.f32 %v65, %v74
    %v76 = vmax.f32 %v75, 0.0
    %v77 = vpack.c.bf16 %v76, %v76
    %v78 = vld [vmem:[#allocation2] sm:$0xff]
    %v79 = vld [vmem:[#allocation2 + $0x8] sm:$0xff]
    %v80 = vld [vmem:[#allocation2 + $0x10] sm:$0xff]
    %v81 = vld [vmem:[#allocation2 + $0x18] sm:$0xf]
    %v82 = vld [vmem:[#allocation2 + $0x1c] sm:$0xff]
    %v83 = vld [vmem:[#allocation2 + $0x24] sm:$0xff]
    %v84 = vld [vmem:[#allocation2 + $0x2c] sm:$0xff]
    %v85 = vld [vmem:[#allocation2 + $0x34] sm:$0xf]
    %v86 = vld [vmem:[#allocation2 + $0x38] sm:$0xff]
    %v87 = vld [vmem:[#allocation2 + $0x40] sm:$0xff]
    %v88 = vld [vmem:[#allocation2 + $0x48] sm:$0xff]
    %v89 = vld [vmem:[#allocation2 + $0x50] sm:$0xf]
    %v90 = vld [vmem:[#allocation2 + $0x54] sm:$0xff]
    %v91 = vld [vmem:[#allocation2 + $0x5c] sm:$0xff]
    %v92 = vld [vmem:[#allocation2 + $0x64] sm:$0xff]
    %v93 = vld [vmem:[#allocation2 + $0x6c] sm:$0xf]
    %v94 = vld [vmem:[#allocation2 + $0x70] sm:$0xff]
    %v95 = vld [vmem:[#allocation2 + $0x78] sm:$0xff]
    %v96 = vld [vmem:[#allocation2 + $0x80] sm:$0xff]
    %v97 = vld [vmem:[#allocation2 + $0x88] sm:$0xf]
    %v98 = vld [vmem:[#allocation2 + $0x8c] sm:$0xff]
    %v99 = vld [vmem:[#allocation2 + $0x94] sm:$0xff]
    %v100 = vld [vmem:[#allocation2 + $0x9c] sm:$0xff]
    %v101 = vld [vmem:[#allocation2 + $0xa4] sm:$0xf]
    %v102 = vld [vmem:[#allocation2 + $0xa8] sm:$0xff]
    %v103 = vld [vmem:[#allocation2 + $0xb0] sm:$0xff]
    %v104 = vld [vmem:[#allocation2 + $0xb8] sm:$0xff]
    %v105 = vld [vmem:[#allocation2 + $0xc0] sm:$0xf]
    %v106 = vld [vmem:[#allocation2 + $0xc4] sm:$0xff]
    %v107 = vld [vmem:[#allocation2 + $0xcc] sm:$0xff]
    %v108 = vld [vmem:[#allocation2 + $0xd4] sm:$0xff]
    %v109 = vld [vmem:[#allocation2 + $0xdc] sm:$0xf]
    %v110 = vld [vmem:[#allocation2 + $0xe0] sm:$0xff]
    %v111 = vld [vmem:[#allocation2 + $0xe8] sm:$0xff]
    %v112 = vld [vmem:[#allocation2 + $0xf0] sm:$0xff]
    %v113 = vld [vmem:[#allocation2 + $0xf8] sm:$0xf]
    %v114 = vld [vmem:[#allocation2 + $0xfc] sm:$0xff]
    %v115 = vld [vmem:[#allocation2 + $0x104] sm:$0xff]
    %v116 = vld [vmem:[#allocation2 + $0x10c] sm:$0xff]
    %v117 = vld [vmem:[#allocation2 + $0x114] sm:$0xf]
    %v118 = vld [vmem:[#allocation2 + $0x118] sm:$0xff]
    %v119 = vld [vmem:[#allocation2 + $0x120] sm:$0xff]
    %v120 = vld [vmem:[#allocation2 + $0x128] sm:$0xff]
    %v121 = vld [vmem:[#allocation2 + $0x130] sm:$0xf]
    %v122 = vld [vmem:[#allocation2 + $0x134] sm:$0xff]
    %v123 = vld [vmem:[#allocation2 + $0x13c] sm:$0xff]
    %v124 = vld [vmem:[#allocation2 + $0x144] sm:$0xff]
    %v125 = vld [vmem:[#allocation2 + $0x14c] sm:$0xf]
    %v126 = vld [vmem:[#allocation2 + $0x150] sm:$0xff]
    %v127 = vld [vmem:[#allocation2 + $0x158] sm:$0xff]
    %v128 = vld [vmem:[#allocation2 + $0x160] sm:$0xff]
    %v129 = vld [vmem:[#allocation2 + $0x168] sm:$0xf]
    %v130 = vld [vmem:[#allocation2 + $0x16c] sm:$0xff]
    %v131 = vld [vmem:[#allocation2 + $0x174] sm:$0xff]
    %v132 = vld [vmem:[#allocation2 + $0x17c] sm:$0xff]
    %v133 = vld [vmem:[#allocation2 + $0x184] sm:$0xf]
    %v134 = vld [vmem:[#allocation2 + $0x188] sm:$0xff]
    %v135 = vld [vmem:[#allocation2 + $0x190] sm:$0xff]
    %v136 = vld [vmem:[#allocation2 + $0x198] sm:$0xff]
    %v137 = vld [vmem:[#allocation2 + $0x1a0] sm:$0xf]
    %v138 = vld [vmem:[#allocation2 + $0x1a4] sm:$0xff]
    %v139 = vld [vmem:[#allocation2 + $0x1ac] sm:$0xff]
    %v140 = vld [vmem:[#allocation2 + $0x1b4] sm:$0xff]
    %v141 = vld [vmem:[#allocation2 + $0x1bc] sm:$0xf]
    %v142 = vld [vmem:[%s4] sm:$0xff]
    %v144 = vlaneseq
    %v145 = vshrl.u32 %v144, 7
    %v146 = vsub.s32 0, %v145
    %v147 = vrot.slane %v142, %v146
    %v148 = vlaneseq
    %v149 = vshrl.u32 %v148, 7
    %v150 = vsub.s32 1, %v149
    %v151 = vrot.slane %v142, %v150
    %v152 = vlaneseq
    %v153 = vshrl.u32 %v152, 7
    %v154 = vsub.s32 2, %v153
    %v155 = vrot.slane %v142, %v154
    %v156 = vlaneseq
    %v157 = vshrl.u32 %v156, 7
    %v158 = vsub.s32 3, %v157
    %v159 = vrot.slane %v142, %v158
    %v160 = vlaneseq
    %v161 = vshrl.u32 %v160, 7
    %v162 = vsub.s32 4, %v161
    %v163 = vrot.slane %v142, %v162
    %v164 = vlaneseq
    %v165 = vshrl.u32 %v164, 7
    %v166 = vsub.s32 5, %v165
    %v167 = vrot.slane %v142, %v166
    %v168 = vlaneseq
    %v169 = vshrl.u32 %v168, 7
    %v170 = vsub.s32 6, %v169
    %v171 = vrot.slane %v142, %v170
    %v243 = vunpack.c.l.b16 %v78
    %v244 = vunpack.c.h.b16 %v78
    %v245 = vunpack.c.l.b16 %v79
    %v246 = vunpack.c.h.b16 %v79
    %v247 = vunpack.c.l.b16 %v80
    %v248 = vunpack.c.h.b16 %v80
    %v249 = vunpack.c.l.b16 %v81
    %v250 = vunpack.c.l.b16 %v82
    %v251 = vunpack.c.h.b16 %v82
    %v252 = vunpack.c.l.b16 %v83
    %v253 = vunpack.c.h.b16 %v83
    %v254 = vunpack.c.l.b16 %v84
    %v255 = vunpack.c.h.b16 %v84
    %v256 = vunpack.c.l.b16 %v85
    %v257 = vunpack.c.l.b16 %v86
    %v258 = vunpack.c.h.b16 %v86
    %v259 = vunpack.c.l.b16 %v87
    %v260 = vunpack.c.h.b16 %v87
    %v261 = vunpack.c.l.b16 %v88
    %v262 = vunpack.c.h.b16 %v88
    %v263 = vunpack.c.l.b16 %v89
    %v264 = vunpack.c.l.b16 %v90
    %v265 = vunpack.c.h.b16 %v90
    %v266 = vunpack.c.l.b16 %v91
    %v267 = vunpack.c.h.b16 %v91
    %v268 = vunpack.c.l.b16 %v92
    %v269 = vunpack.c.h.b16 %v92
    %v270 = vunpack.c.l.b16 %v93
    %v271 = vunpack.c.l.b16 %v94
    %v272 = vunpack.c.h.b16 %v94
    %v273 = vunpack.c.l.b16 %v95
    %v274 = vunpack.c.h.b16 %v95
    %v275 = vunpack.c.l.b16 %v96
    %v276 = vunpack.c.h.b16 %v96
    %v277 = vunpack.c.l.b16 %v97
    %v278 = vunpack.c.l.b16 %v98
    %v279 = vunpack.c.h.b16 %v98
    %v280 = vunpack.c.l.b16 %v99
    %v281 = vunpack.c.h.b16 %v99
    %v282 = vunpack.c.l.b16 %v100
    %v283 = vunpack.c.h.b16 %v100
    %v284 = vunpack.c.l.b16 %v101
    %v285 = vunpack.c.l.b16 %v102
    %v286 = vunpack.c.h.b16 %v102
    %v287 = vunpack.c.l.b16 %v103
    %v288 = vunpack.c.h.b16 %v103
    %v289 = vunpack.c.l.b16 %v104
    %v290 = vunpack.c.h.b16 %v104
    %v291 = vunpack.c.l.b16 %v105
    %v292 = vunpack.c.l.b16 %v106
    %v293 = vunpack.c.h.b16 %v106
    %v294 = vunpack.c.l.b16 %v107
    %v295 = vunpack.c.h.b16 %v107
    %v296 = vunpack.c.l.b16 %v108
    %v297 = vunpack.c.h.b16 %v108
    %v298 = vunpack.c.l.b16 %v109
    %v299 = vunpack.c.l.b16 %v110
    %v300 = vunpack.c.h.b16 %v110
    %v301 = vunpack.c.l.b16 %v111
    %v302 = vunpack.c.h.b16 %v111
    %v303 = vunpack.c.l.b16 %v112
    %v304 = vunpack.c.h.b16 %v112
    %v305 = vunpack.c.l.b16 %v113
    %v306 = vunpack.c.l.b16 %v114
    %v307 = vunpack.c.h.b16 %v114
    %v308 = vunpack.c.l.b16 %v115
    %v309 = vunpack.c.h.b16 %v115
    %v310 = vunpack.c.l.b16 %v116
    %v311 = vunpack.c.h.b16 %v116
    %v312 = vunpack.c.l.b16 %v117
    %v313 = vunpack.c.l.b16 %v118
    %v314 = vunpack.c.h.b16 %v118
    %v315 = vunpack.c.l.b16 %v119
    %v316 = vunpack.c.h.b16 %v119
    %v317 = vunpack.c.l.b16 %v120
    %v318 = vunpack.c.h.b16 %v120
    %v319 = vunpack.c.l.b16 %v121
    %v320 = vunpack.c.l.b16 %v122
    %v321 = vunpack.c.h.b16 %v122
    %v322 = vunpack.c.l.b16 %v123
    %v323 = vunpack.c.h.b16 %v123
    %v324 = vunpack.c.l.b16 %v124
    %v325 = vunpack.c.h.b16 %v124
    %v326 = vunpack.c.l.b16 %v125
    %v327 = vunpack.c.l.b16 %v126
    %v328 = vunpack.c.h.b16 %v126
    %v329 = vunpack.c.l.b16 %v127
    %v330 = vunpack.c.h.b16 %v127
    %v331 = vunpack.c.l.b16 %v128
    %v332 = vunpack.c.h.b16 %v128
    %v333 = vunpack.c.l.b16 %v129
    %v334 = vunpack.c.l.b16 %v130
    %v335 = vunpack.c.h.b16 %v130
    %v336 = vunpack.c.l.b16 %v131
    %v337 = vunpack.c.h.b16 %v131
    %v338 = vunpack.c.l.b16 %v132
    %v339 = vunpack.c.h.b16 %v132
    %v340 = vunpack.c.l.b16 %v133
    %v341 = vunpack.c.l.b16 %v134
    %v342 = vunpack.c.h.b16 %v134
    %v343 = vunpack.c.l.b16 %v135
    %v344 = vunpack.c.h.b16 %v135
    %v345 = vunpack.c.l.b16 %v136
    %v346 = vunpack.c.h.b16 %v136
    %v347 = vunpack.c.l.b16 %v137
    %v348 = vunpack.c.l.b16 %v138
    %v349 = vunpack.c.h.b16 %v138
    %v350 = vunpack.c.l.b16 %v139
    %v351 = vunpack.c.h.b16 %v139
    %v352 = vunpack.c.l.b16 %v140
    %v353 = vunpack.c.h.b16 %v140
    %v354 = vunpack.c.l.b16 %v141
    %v355 = vpack.c.b16 %v250, %v243
    %v356 = vpack.c.b16 %v251, %v244
    %v357 = vpack.c.b16 %v252, %v245
    %v358 = vpack.c.b16 %v253, %v246
    %v359 = vpack.c.b16 %v254, %v247
    %v360 = vpack.c.b16 %v255, %v248
    %v361 = vpack.c.b16 %v256, %v249
    %v362 = vpack.c.b16 %v264, %v257
    %v363 = vpack.c.b16 %v265, %v258
    %v364 = vpack.c.b16 %v266, %v259
    %v365 = vpack.c.b16 %v267, %v260
    %v366 = vpack.c.b16 %v268, %v261
    %v367 = vpack.c.b16 %v269, %v262
    %v368 = vpack.c.b16 %v270, %v263
    %v369 = vpack.c.b16 %v278, %v271
    %v370 = vpack.c.b16 %v279, %v272
    %v371 = vpack.c.b16 %v280, %v273
    %v372 = vpack.c.b16 %v281, %v274
    %v373 = vpack.c.b16 %v282, %v275
    %v374 = vpack.c.b16 %v283, %v276
    %v375 = vpack.c.b16 %v284, %v277
    %v376 = vpack.c.b16 %v292, %v285
    %v377 = vpack.c.b16 %v293, %v286
    %v378 = vpack.c.b16 %v294, %v287
    %v379 = vpack.c.b16 %v295, %v288
    %v380 = vpack.c.b16 %v296, %v289
    %v381 = vpack.c.b16 %v297, %v290
    %v382 = vpack.c.b16 %v298, %v291
    %v383 = vpack.c.b16 %v306, %v299
    %v384 = vpack.c.b16 %v307, %v300
    %v385 = vpack.c.b16 %v308, %v301
    %v386 = vpack.c.b16 %v309, %v302
    %v387 = vpack.c.b16 %v310, %v303
    %v388 = vpack.c.b16 %v311, %v304
    %v389 = vpack.c.b16 %v312, %v305
    %v390 = vpack.c.b16 %v320, %v313
    %v391 = vpack.c.b16 %v321, %v314
    %v392 = vpack.c.b16 %v322, %v315
    %v393 = vpack.c.b16 %v323, %v316
    %v394 = vpack.c.b16 %v324, %v317
    %v395 = vpack.c.b16 %v325, %v318
    %v396 = vpack.c.b16 %v326, %v319
    %v397 = vpack.c.b16 %v334, %v327
    %v398 = vpack.c.b16 %v335, %v328
    %v399 = vpack.c.b16 %v336, %v329
    %v400 = vpack.c.b16 %v337, %v330
    %v401 = vpack.c.b16 %v338, %v331
    %v402 = vpack.c.b16 %v339, %v332
    %v403 = vpack.c.b16 %v340, %v333
    %v404 = vpack.c.b16 %v348, %v341
    %v405 = vpack.c.b16 %v349, %v342
    %v406 = vpack.c.b16 %v350, %v343
    %v407 = vpack.c.b16 %v351, %v344
    %v408 = vpack.c.b16 %v352, %v345
    %v409 = vpack.c.b16 %v353, %v346
    %v410 = vpack.c.b16 %v354, %v347
    %467 = vmatprep.subr.bf16.mxu0 %v356
    %468 = vmatpush1.bf16.msra.mxu0 %v355
    %469 = vmatprep.subr.bf16.mxu0 %v363
    %470 = vmatpush1.bf16.msra.mxu0 %v362
    %471 = vmatprep.subr.bf16.mxu0 %v370
    %472 = vmatpush1.bf16.msra.mxu0 %v369
    %473 = vmatprep.subr.bf16.mxu0 %v377
    %474 = vmatpush1.bf16.msra.mxu0 %v376
    %475 = vmatprep.subr.bf16.mxu0 %v384
    %476 = vmatpush1.bf16.msra.mxu0 %v383
    %477 = vmatprep.subr.bf16.mxu0 %v391
    %478 = vmatpush1.bf16.msra.mxu0 %v390
    %479 = vmatprep.subr.bf16.mxu0 %v398
    %480 = vmatpush1.bf16.msra.mxu0 %v397
    %481 = vmatprep.subr.bf16.mxu0 %v405
    %482 = vmatpush1.bf16.msra.mxu0 %v404
    %483 = vmatprep.subr.bf16.mxu0 0
    %484 = vmatpush1.bf16.msra.mxu0 0
    %485 = vmatprep.subr.bf16.mxu0 0
    %486 = vmatpush1.bf16.msra.mxu0 0
    %487 = vmatprep.subr.bf16.mxu0 0
    %488 = vmatpush1.bf16.msra.mxu0 0
    %489 = vmatprep.subr.bf16.mxu0 0
    %490 = vmatpush1.bf16.msra.mxu0 0
    %491 = vmatprep.subr.bf16.mxu0 0
    %492 = vmatpush1.bf16.msra.mxu0 0
    %493 = vmatprep.subr.bf16.mxu0 0
    %494 = vmatpush1.bf16.msra.mxu0 0
    %495 = vmatprep.subr.bf16.mxu0 0
    %496 = vmatpush1.bf16.msra.mxu0 0
    %497 = vmatprep.subr.bf16.mxu0 0
    %498 = vmatpush1.bf16.msra.mxu0 0
    %499 = vmatprep.mubr.bf16.mxu0 0
    %500 = vmatmul.mubr.bf16.gmra.mrb[0].mxu0 %v77
    %v501 = vpop.f32.mrb[0].mxu0
    %v502 = vadd.f32 %v147, %v501
    %v503 = vpop.f32.mrb[0].mxu0
    %v504 = vadd.f32 %v151, %v503
    %v505 = vpop.f32.mrb[0].mxu0
    %v506 = vpop.f32.mrb[0].mxu0
    %507 = vdwg.mxu0
    %508 = vmatprep.subr.bf16.mxu0 %v358
    %509 = vmatpush1.bf16.msra.mxu0 %v357
    %510 = vmatprep.subr.bf16.mxu0 %v365
    %511 = vmatpush1.bf16.msra.mxu0 %v364
    %512 = vmatprep.subr.bf16.mxu0 %v372
    %513 = vmatpush1.bf16.msra.mxu0 %v371
    %514 = vmatprep.subr.bf16.mxu0 %v379
    %515 = vmatpush1.bf16.msra.mxu0 %v378
    %516 = vmatprep.subr.bf16.mxu0 %v386
    %517 = vmatpush1.bf16.msra.mxu0 %v385
    %518 = vmatprep.subr.bf16.mxu0 %v393
    %519 = vmatpush1.bf16.msra.mxu0 %v392
    %520 = vmatprep.subr.bf16.mxu0 %v400
    %521 = vmatpush1.bf16.msra.mxu0 %v399
    %522 = vmatprep.subr.bf16.mxu0 %v407
    %523 = vmatpush1.bf16.msra.mxu0 %v406
    %524 = vmatprep.subr.bf16.mxu0 0
    %525 = vmatpush1.bf16.msra.mxu0 0
    %526 = vmatprep.subr.bf16.mxu0 0
    %527 = vmatpush1.bf16.msra.mxu0 0
    %528 = vmatprep.subr.bf16.mxu0 0
    %529 = vmatpush1.bf16.msra.mxu0 0
    %530 = vmatprep.subr.bf16.mxu0 0
    %531 = vmatpush1.bf16.msra.mxu0 0
    %532 = vmatprep.subr.bf16.mxu0 0
    %533 = vmatpush1.bf16.msra.mxu0 0
    %534 = vmatprep.subr.bf16.mxu0 0
    %535 = vmatpush1.bf16.msra.mxu0 0
    %536 = vmatprep.subr.bf16.mxu0 0
    %537 = vmatpush1.bf16.msra.mxu0 0
    %538 = vmatprep.subr.bf16.mxu0 0
    %539 = vmatpush1.bf16.msra.mxu0 0
    %540 = vmatprep.mubr.bf16.mxu0 0
    %541 = vmatmul.mubr.bf16.gmra.mrb[0].mxu0 %v77
    %v542 = vpop.f32.mrb[0].mxu0
    %v543 = vadd.f32 %v155, %v542
    %v544 = vpop.f32.mrb[0].mxu0
    %v545 = vadd.f32 %v159, %v544
    %v546 = vpop.f32.mrb[0].mxu0
    %v547 = vpop.f32.mrb[0].mxu0
    %548 = vdwg.mxu0
    %549 = vmatprep.subr.bf16.mxu0 %v360
    %550 = vmatpush1.bf16.msra.mxu0 %v359
    %551 = vmatprep.subr.bf16.mxu0 %v367
    %552 = vmatpush1.bf16.msra.mxu0 %v366
    %553 = vmatprep.subr.bf16.mxu0 %v374
    %554 = vmatpush1.bf16.msra.mxu0 %v373
    %555 = vmatprep.subr.bf16.mxu0 %v381
    %556 = vmatpush1.bf16.msra.mxu0 %v380
    %557 = vmatprep.subr.bf16.mxu0 %v388
    %558 = vmatpush1.bf16.msra.mxu0 %v387
    %559 = vmatprep.subr.bf16.mxu0 %v395
    %560 = vmatpush1.bf16.msra.mxu0 %v394
    %561 = vmatprep.subr.bf16.mxu0 %v402
    %562 = vmatpush1.bf16.msra.mxu0 %v401
    %563 = vmatprep.subr.bf16.mxu0 %v409
    %564 = vmatpush1.bf16.msra.mxu0 %v408
    %565 = vmatprep.subr.bf16.mxu0 0
    %566 = vmatpush1.bf16.msra.mxu0 0
    %567 = vmatprep.subr.bf16.mxu0 0
    %568 = vmatpush1.bf16.msra.mxu0 0
    %569 = vmatprep.subr.bf16.mxu0 0
    %570 = vmatpush1.bf16.msra.mxu0 0
    %571 = vmatprep.subr.bf16.mxu0 0
    %572 = vmatpush1.bf16.msra.mxu0 0
    %573 = vmatprep.subr.bf16.mxu0 0
    %574 = vmatpush1.bf16.msra.mxu0 0
    %575 = vmatprep.subr.bf16.mxu0 0
    %576 = vmatpush1.bf16.msra.mxu0 0
    %577 = vmatprep.subr.bf16.mxu0 0
    %578 = vmatpush1.bf16.msra.mxu0 0
    %579 = vmatprep.subr.bf16.mxu0 0
    %580 = vmatpush1.bf16.msra.mxu0 0
    %581 = vmatprep.mubr.bf16.mxu0 0
    %582 = vmatmul.mubr.bf16.gmra.mrb[0].mxu0 %v77
    %v583 = vpop.f32.mrb[0].mxu0
    %v584 = vadd.f32 %v163, %v583
    %v585 = vpop.f32.mrb[0].mxu0
    %v586 = vadd.f32 %v167, %v585
    %v587 = vpop.f32.mrb[0].mxu0
    %v588 = vpop.f32.mrb[0].mxu0
    %589 = vdwg.mxu0
    %590 = vmatprep.subr.bf16.mxu0 0
    %591 = vmatpush1.bf16.msra.mxu0 %v361
    %592 = vmatprep.subr.bf16.mxu0 0
    %593 = vmatpush1.bf16.msra.mxu0 %v368
    %594 = vmatprep.subr.bf16.mxu0 0
    %595 = vmatpush1.bf16.msra.mxu0 %v375
    %596 = vmatprep.subr.bf16.mxu0 0
    %597 = vmatpush1.bf16.msra.mxu0 %v382
    %598 = vmatprep.subr.bf16.mxu0 0
    %599 = vmatpush1.bf16.msra.mxu0 %v389
    %600 = vmatprep.subr.bf16.mxu0 0
    %601 = vmatpush1.bf16.msra.mxu0 %v396
    %602 = vmatprep.subr.bf16.mxu0 0
    %603 = vmatpush1.bf16.msra.mxu0 %v403
    %604 = vmatprep.subr.bf16.mxu0 0
    %605 = vmatpush1.bf16.msra.mxu0 %v410
    %606 = vmatprep.subr.bf16.mxu0 0
    %607 = vmatpush1.bf16.msra.mxu0 0
    %608 = vmatprep.subr.bf16.mxu0 0
    %609 = vmatpush1.bf16.msra.mxu0 0
    %610 = vmatprep.subr.bf16.mxu0 0
    %611 = vmatpush1.bf16.msra.mxu0 0
    %612 = vmatprep.subr.bf16.mxu0 0
    %613 = vmatpush1.bf16.msra.mxu0 0
    %614 = vmatprep.subr.bf16.mxu0 0
    %615 = vmatpush1.bf16.msra.mxu0 0
    %616 = vmatprep.subr.bf16.mxu0 0
    %617 = vmatpush1.bf16.msra.mxu0 0
    %618 = vmatprep.subr.bf16.mxu0 0
    %619 = vmatpush1.bf16.msra.mxu0 0
    %620 = vmatprep.subr.bf16.mxu0 0
    %621 = vmatpush1.bf16.msra.mxu0 0
    %622 = vmatprep.mubr.bf16.mxu0 0
    %623 = vmatmul.mubr.bf16.gmra.mrb[0].mxu0 %v77
    %v624 = vpop.f32.mrb[0].mxu0
    %v625 = vadd.f32 %v171, %v624
    %v626 = vpop.f32.mrb[0].mxu0
    %v627 = vpop.f32.mrb[0].mxu0
    %v628 = vpop.f32.mrb[0].mxu0
    %629 = vdwg.mxu0
    %630 = vst [vmem:[#allocation5] sm:$0xff] %v502
    %631 = vst [vmem:[#allocation5 + $0x8] sm:$0xff] %v504
    %632 = vst [vmem:[#allocation5 + $0x10] sm:$0xff] %v543
    %633 = vst [vmem:[#allocation5 + $0x18] sm:$0xff] %v545
    %634 = vst [vmem:[#allocation5 + $0x20] sm:$0xff] %v584
    %635 = vst [vmem:[#allocation5 + $0x28] sm:$0xff] %v586
    %636 = vst [vmem:[#allocation5 + $0x30] sm:$0xff] %v625
    // Predicated region
    $region26: #{tpu_custom_call.1} parent=1 // pred_check
      _
    $region27: #{tpu_custom_call.1} parent=1 // pred_check_branch
      %638 = sbr.rel (0) target = $region29
    $region28: #{tpu_custom_call.1} parent=1 // pred_region
      %s640 = ssub.s32 896, 896
      %641 = vsyncadd [#allocation4], %s640
      %s643 = sshll.u32 [#allocation5], 4
      %s644 = int_to_ptr.vmem [resolvable:$true] %s643
      %646 = dma.vmem_to_hbm [thread:$0]  %s644, 896, %s5, [#allocation4]
    $region29: #{tpu_custom_call.1} parent=1 // pred_fallthru
      _
    // Predicated region
    $region30: #{tpu_custom_call.1} parent=1 // pred_check
      _
    $region31: #{tpu_custom_call.1} parent=1 // pred_check_branch
      %648 = sbr.rel (0) target = $region33
    $region32: #{tpu_custom_call.1} parent=1 // pred_region
      %649 = dma.done [#allocation4], 896
    $region33: #{tpu_custom_call.1} parent=1 // pred_fallthru
      _
    %650 = vsyncpa [#allocation3], 1
    %651 = vsyncpa [#allocation4], 1

</llo_original>
